<compile_context>
chip_gen: v5e
topology: v5e:2x2
jax: 0.10.0
libtpu: 0.0.40
codegen_flags: <defaults>
</compile_context>

<pallas_src>
import functools

import jax
import jax.numpy as jnp
import numpy as np
from jax.experimental import pallas as pl
from jax.experimental.pallas import tpu as pltpu


LANES = 128
SUBLANES = 8


def _vmem_config():
    """(vmem_limit_bytes, streaming_budget_bytes), generation-conditional."""
    try:
        cap = pltpu.get_tpu_info().vmem_capacity_bytes
    except Exception:  # no TPU info available -> conservative default
        cap = 64 * 1024 * 1024
    if cap >= 128 * 1024 * 1024:          # v5e / v6e: 128 MiB physical VMEM
        return 96 * 1024 * 1024, 24 * 1024 * 1024
    return 48 * 1024 * 1024, 12 * 1024 * 1024   # v7x: 64 MiB physical VMEM


VMEM_LIMIT, STREAM_BUDGET = _vmem_config()


def _largest_divisor(n, limit, align):
    """Largest divisor of n that is <= limit and a multiple of align (0 if none)."""
    best = 0
    d = 1
    while d * d <= n:
        if n % d == 0:
            for c in (d, n // d):
                if c <= limit and c % align == 0 and c > best:
                    best = c
        d += 1
    return best


# ----------------------------------------------------------------------------
# Pallas kernel: tiled copy
# ----------------------------------------------------------------------------
def _copy_kernel(x_ref, o_ref):
    o_ref[...] = x_ref[...]


def _pallas_copy_2d(x2d):
    """Copy a 2-D array through a Pallas kernel, row-tiled and lane-dense."""
    R, C = x2d.shape
    itemsize = jnp.dtype(x2d.dtype).itemsize

    # Double-buffered input + output tiles must fit in the streaming budget.
    per_row = 2 * 2 * C * itemsize
    cap = max(SUBLANES, STREAM_BUDGET // max(per_row, 1))
    tr = _largest_divisor(R, min(cap, R), SUBLANES)

    if tr == 0 or tr == R:
        # Single block (covers arrays smaller than an (8,128) tile and the
        # case where no aligned divisor exists: full-array block is allowed).
        return pl.pallas_call(
            _copy_kernel,
            out_shape=jax.ShapeDtypeStruct((R, C), x2d.dtype),
            compiler_params=pltpu.CompilerParams(vmem_limit_bytes=VMEM_LIMIT),
        )(x2d)

    return pl.pallas_call(
        _copy_kernel,
        out_shape=jax.ShapeDtypeStruct((R, C), x2d.dtype),
        grid=(R // tr,),
        in_specs=[pl.BlockSpec((tr, C), lambda i: (i, 0))],
        out_specs=pl.BlockSpec((tr, C), lambda i: (i, 0)),
        compiler_params=pltpu.CompilerParams(
            dimension_semantics=("parallel",),   # megacore split on v7x
            vmem_limit_bytes=VMEM_LIMIT),
    )(x2d)


# ----------------------------------------------------------------------------
# View wrapper (torch .view semantics, including a single -1 dimension)
# ----------------------------------------------------------------------------
def _resolve_size(numel, size):
    size = list(size)
    neg = [i for i, s in enumerate(size) if s == -1]
    if len(neg) > 1:
        raise ValueError("only one dimension may be -1")
    if neg:
        known = 1
        for s in size:
            if s != -1:
                known *= s
        if known == 0 or numel % known != 0:
            raise ValueError(f"cannot view {numel} elements as {tuple(size)}")
        size[neg[0]] = numel // known
    total = 1
    for s in size:
        total *= s
    if total != numel:
        raise ValueError(f"shape {tuple(size)} is invalid for {numel} elements")
    return tuple(size)


def pallas_view(x, size):
    """Equivalent of torch `tensor.view(size)` with the data movement done by
    a Pallas TPU copy kernel."""
    out_shape = _resolve_size(x.size, size)
    total = x.size

    flat = jnp.reshape(x, (total,))            # row-major: metadata only

    if total % LANES == 0:
        cols = LANES
        for c in (2048, 1024, 512, 256):       # widen lanes when divisible
            if total % c == 0:
                cols = c
                break
        y = _pallas_copy_2d(flat.reshape(total // cols, cols)).reshape(total)
    else:
        # Pad the tail to a full 128-lane row so stores stay unmasked, then crop.
        pad = (-total) % LANES
        x2 = jnp.pad(flat, (0, pad)).reshape(-1, LANES)
        y = _pallas_copy_2d(x2).reshape(-1)[:total]

    return y.reshape(out_shape)


# ----------------------------------------------------------------------------
if __name__ == "__main__":
    key = jax.random.PRNGKey(0)
    B, C, H, W = 2, 4, 16, 16
    x = jax.random.normal(key, (B, C, H, W), jnp.float32)

    # View((B, -1)) — the typical usage inside a Sequential (flatten).
    view_flat = jax.jit(functools.partial(pallas_view, size=(B, -1)))
    y = jax.block_until_ready(view_flat(x))
    assert y.shape == (B, C * H * W)
    np.testing.assert_array_equal(np.asarray(y),
                                  np.asarray(x).reshape(B, -1))

    # View((-1, C, H, W)) — unflatten back (round-trip check).
    z = jax.block_until_ready(pallas_view(y, (-1, C, H, W)))
    assert z.shape == (B, C, H, W)
    np.testing.assert_array_equal(np.asarray(z), np.asarray(x))

    # Non-lane-aligned total (exercises the padded path) + bf16 dtype.
    x_odd = jax.random.normal(jax.random.PRNGKey(1), (3, 5, 7),
                              jnp.float32).astype(jnp.bfloat16)
    y_odd = jax.block_until_ready(pallas_view(x_odd, (-1, 35)))
    np.testing.assert_array_equal(np.asarray(y_odd),
                                  np.asarray(x_odd).reshape(-1, 35))

    print("KERNEL_OK")
</pallas_src>

<mosaic_0001>
module attributes {stable_mosaic.version = 11 : i64} {
  func.func @_copy_kernel(%arg0: memref<1x2048xf32, #tpu.memory_space<vmem>>, %arg1: memref<1x2048xf32, #tpu.memory_space<vmem>>) attributes {dimension_semantics = [], scalar_prefetch = 0 : i64, scratch_operands = 0 : i64, tpu.core_type = #tpu.core_type<tc>} {
    %c0 = arith.constant 0 : index
    %c0_0 = arith.constant 0 : index
    %0 = vector.load %arg0[%c0, %c0_0] : memref<1x2048xf32, #tpu.memory_space<vmem>>, vector<1x2048xf32>
    %c0_1 = arith.constant 0 : index
    %c0_2 = arith.constant 0 : index
    %1 = vector.load %arg1[%c0_1, %c0_2] : memref<1x2048xf32, #tpu.memory_space<vmem>>, vector<1x2048xf32>
    tpu.vector_store %arg1[%c0_1, %c0_2], %0 {strides = array<i32>} : memref<1x2048xf32, #tpu.memory_space<vmem>>, vector<1x2048xf32>,
    return
  }
}

</mosaic_0001>

<llo_original>
// kernel: pallas_view.1
$region0: #{pallas_view.1}
  #allocation0 [shape = 'u32[]', space=smem, size = 0x4, offset = 0x4, fixed_abs, tag = 'smem constant byte address 0x4 - core index']
  #allocation1 [shape = 'u32[72,128]{1,0:T(1,128)}', space=vmem, size = 0x9000, scoped, tag = 'internal scratch']
  %s0 = inlined_call_operand.vmem [shape: f32[1,2048], index: 0, kind: input, shape index: {}]
  %s1 = inlined_call_operand.vmem [shape: f32[1,2048], index: 1, kind: output, shape index: {}]
  %s2 = sld [smem:[#allocation0]]
  $region14: #{pallas_view.1} parent=0
    _
  %s4 = ssub.s32 1, %s2
  %s5 = scalar_select 0, %s4, %s2
  // Predicated region
  $region2: #{pallas_view.1} parent=0 // pred_check
    _
  $region3: #{pallas_view.1} parent=0 // pred_check_branch
    %7 = sbr.rel (0) target = $region5
  $region4: #{pallas_view.1} parent=0 // pred_region
    _
  $region5: #{pallas_view.1} parent=0 // pred_fallthru
    _
  %v8 = vld [vmem:[%s0] sm:$0xff]
  %v9 = vld [vmem:[%s0 + $0x8] sm:$0xff]
  %10 = vst [vmem:[%s1] sm:$0xff] %v8
  %11 = vst [vmem:[%s1 + $0x8] sm:$0xff] %v9
  // Predicated region
  $region6: #{pallas_view.1} parent=0 // pred_check
    _
  $region7: #{pallas_view.1} parent=0 // pred_check_branch
    %13 = sbr.rel (0) target = $region9
  $region8: #{pallas_view.1} parent=0 // pred_region
    _
  $region9: #{pallas_view.1} parent=0 // pred_fallthru
    _
  // Predicated region
  $region10: #{pallas_view.1} parent=0 // pred_check
    _
  $region11: #{pallas_view.1} parent=0 // pred_check_branch
    %15 = sbr.rel (0) target = $region13
  $region12: #{pallas_view.1} parent=0 // pred_region
    _
  $region13: #{pallas_view.1} parent=0 // pred_fallthru
    _

</llo_original>
